<compile_context>
chip_gen: v6e
topology: v6e:2x2x1
jax: 0.10.0
libtpu: 0.0.40
codegen_flags: <defaults>
</compile_context>

<pallas_src>
import jax
import jax.numpy as jnp
from jax.experimental import pallas as pl
from jax.experimental.pallas import tpu as pltpu


# ---------------------------------------------------------------------------
# Layer 0: MLPLayer (dense + relu), row-tiled.
# ---------------------------------------------------------------------------
def mlp_kernel(x_ref, w_ref, b_ref, h_ref):
    h_ref[...] = jnp.maximum(
        jnp.dot(x_ref[...], w_ref[...], preferred_element_type=jnp.float32)
        + b_ref[...], 0.0)


def mlp_forward(x, w1, b1, *, tile_v=32):
    n, f_in = x.shape
    hidden = w1.shape[1]
    assert n % tile_v == 0
    return pl.pallas_call(
        mlp_kernel,
        out_shape=jax.ShapeDtypeStruct((n, hidden), jnp.float32),
        grid=(n // tile_v,),
        in_specs=[
            pl.BlockSpec((tile_v, f_in), lambda i: (i, 0)),   # x rows, streamed
            pl.BlockSpec((f_in, hidden), lambda i: (0, 0)),   # W1, resident
            pl.BlockSpec((1, hidden), lambda i: (0, 0)),      # b1, resident
        ],
        out_specs=pl.BlockSpec((tile_v, hidden), lambda i: (i, 0)),
        compiler_params=pltpu.CompilerParams(
            dimension_semantics=("parallel",)),
    )(x, w1, b1)


# ---------------------------------------------------------------------------
# Layer 1: GATConv-style graph attention (single head), destination-row tiled.
# ---------------------------------------------------------------------------
def gat_attn_kernel(h_ref, adj_ref, w_ref, b_ref, wl_ref, out_ref, er_scr):
    tile_v, f_out = out_ref.shape

    h = h_ref[...]                               # (N, F_h), resident across tiles

    # One fused MXU matmul for ll() and attn_r():  proj = [ ft | er + bl + br ].
    # Recomputed per row tile: h is VMEM-resident so this touches no HBM, and it
    # keeps every grid step independent (required for "parallel" semantics).
    proj = jnp.dot(h, w_ref[...], preferred_element_type=jnp.float32) + b_ref[...]
    ft = proj[:, :f_out]                         # (N, F_out), bll already folded in
    er_scr[...] = proj[:, f_out:f_out + 1]       # (N, 1): er + bl + br

    # attn_l() as a row without shipping feat^T from HBM: contract the minor
    # dims (QK^T pattern) against the resident h.
    el_row = jax.lax.dot_general(
        wl_ref[...], h, (((1,), (1,)), ((), ())),
        preferred_element_type=jnp.float32)      # (1, N)

    # Destination rows handled by this grid step.
    v0 = pl.multiple_of(pl.program_id(0) * tile_v, tile_v)
    er_tile = er_scr[pl.ds(v0, tile_v), :]       # (TILE_V, 1)

    # e[v,u] = relu(el[u] + er[v]) + 1, restricted to existing edges (int8 adj).
    scores = jnp.maximum(el_row + er_tile, 0.0) + 1.0          # (TILE_V, N)
    masked = jnp.where(adj_ref[...] > 0, scores, -1e30)

    # edge_softmax over the source axis.  exp(-1e30 - row_max) underflows to
    # exactly 0 so no second select is needed; every destination has a
    # self-loop, hence row_max >= 1 and denom >= 1 (no zero-degree guard).
    row_max = jnp.max(masked, axis=1, keepdims=True)           # (TILE_V, 1)
    ex = jnp.exp(masked - row_max)                             # 0 on non-edges
    denom = jnp.sum(ex, axis=1, keepdims=True)                 # (TILE_V, 1)

    # Deferred normalization + bf16 attention matmul with f32 accumulation:
    #   rst = (ex @ ft) * 1/denom   (bll folds through since attn rows sum to 1)
    acc = jnp.dot(ex.astype(jnp.bfloat16), ft.astype(jnp.bfloat16),
                  preferred_element_type=jnp.float32)          # (TILE_V, F_out)
    out_ref[...] = (acc * pl.reciprocal(denom, approx=True)).astype(out_ref.dtype)


def gat_attn_forward(h, adj_i8, wl, bl, wr, br, wll, bll, *, tile_v=32):
    n, f_h = h.shape
    f_out = wll.shape[1]
    assert n % tile_v == 0
    assert tile_v % 32 == 0          # int8 adj blocks: (32, 128) sublane tiling

    # Pack the two well-shaped projections into ONE matmul and fold every bias:
    #   W = [ Wll | wr ]   (F_h, F_out+1),   B = [ bll | bl + br ]  (1, F_out+1)
    w_packed = jnp.concatenate([wll, wr], axis=1)
    b_packed = jnp.concatenate([bll, (bl + br).reshape(1, 1)], axis=1)

    return pl.pallas_call(
        gat_attn_kernel,
        out_shape=jax.ShapeDtypeStruct((n, f_out), jnp.float32),
        grid=(n // tile_v,),
        in_specs=[
            pl.BlockSpec((n, f_h), lambda i: (0, 0)),             # h: resident
            pl.BlockSpec((tile_v, n), lambda i: (i, 0)),          # adj: int8, streamed
            pl.BlockSpec((f_h, f_out + 1), lambda i: (0, 0)),     # packed W: resident
            pl.BlockSpec((1, f_out + 1), lambda i: (0, 0)),       # packed B: resident
            pl.BlockSpec((1, f_h), lambda i: (0, 0)),             # attn_l weight row
        ],
        out_specs=pl.BlockSpec((tile_v, f_out), lambda i: (i, 0)),
        scratch_shapes=[pltpu.VMEM((n, 1), jnp.float32)],         # er column
        compiler_params=pltpu.CompilerParams(
            dimension_semantics=("parallel",)),                   # megacore / v7x 2 TCs
    )(h, adj_i8, w_packed, b_packed, wl)


# ---------------------------------------------------------------------------
# Pure-JAX f32 reference for the whole pipeline.
# ---------------------------------------------------------------------------
def mixgat_reference(x, adj_f32, w1, b1, wl, bl, wr, br, wll, bll):
    h = jnp.maximum(x @ w1 + b1, 0.0)
    el = jnp.transpose(h @ jnp.transpose(wl) + bl)               # (1, N)
    er = h @ wr + br                                             # (N, 1)
    ft = h @ wll + bll                                           # (N, F_out)
    scores = jnp.maximum(el + er, 0.0) + 1.0
    has_edge = adj_f32 > 0.0
    masked = jnp.where(has_edge, scores, -1e30)
    ex = jnp.where(has_edge,
                   jnp.exp(masked - jnp.max(masked, axis=1, keepdims=True)), 0.0)
    attn = ex / jnp.sum(ex, axis=1, keepdims=True)
    return attn @ ft


if __name__ == "__main__":
    # Small stand-ins for mixgat(input_dim, output_dim): input_dim=16,
    # MLP hidden 512 -> 64, GATConv out_feats=32, single head (see TODO).
    N, in_feats, hidden, out_feats, tile_v = 128, 16, 64, 32, 32

    key = jax.random.PRNGKey(0)
    k_x, k_adj, k_w1, k_b1, k_wl, k_wr, k_wll, k_b = jax.random.split(key, 8)

    x = jax.random.normal(k_x, (N, in_feats), dtype=jnp.float32)

    # Random directed graph; adj[v, u] = 1 means edge u -> v.  Self-loops ensure
    # every destination has >= 1 incoming edge (precondition for the dropped
    # softmax guards).  Shipped to the kernel as int8.
    adj_f32 = (jax.random.uniform(k_adj, (N, N)) < 0.2).astype(jnp.float32)
    adj_f32 = jnp.maximum(adj_f32, jnp.eye(N, dtype=jnp.float32))
    adj_i8 = adj_f32.astype(jnp.int8)

    # --- MLPLayer params (nn.Linear-style uniform init) ---
    bound1 = 1.0 / jnp.sqrt(in_feats)
    w1 = jax.random.uniform(k_w1, (in_feats, hidden), jnp.float32, -bound1, bound1)
    b1 = jax.random.uniform(k_b1, (1, hidden), jnp.float32, -bound1, bound1)

    # --- GAT attention params (xavier-normal-ish attn vectors, uniform ll) ---
    gain = jnp.sqrt(2.0)  # calculate_gain('relu')
    std_attn = gain * jnp.sqrt(2.0 / (hidden + 1))
    wl = std_attn * jax.random.normal(k_wl, (1, hidden), dtype=jnp.float32)      # attn_l.weight
    wr_row = std_attn * jax.random.normal(k_wr, (1, hidden), dtype=jnp.float32)  # attn_r.weight
    bound2 = 1.0 / jnp.sqrt(hidden)
    wll_full = jax.random.uniform(k_wll, (out_feats, hidden), jnp.float32, -bound2, bound2)
    b_all = jax.random.uniform(k_b, (2 + out_feats,), jnp.float32, -bound2, bound2)
    bl = b_all[:1].reshape(1, 1)                  # attn_l.bias
    br = b_all[1:2].reshape(1, 1)                 # attn_r.bias
    bll = b_all[2:].reshape(1, out_feats)         # ll.bias

    wr = jnp.transpose(wr_row)                    # (hidden, 1)
    wll = jnp.transpose(wll_full)                 # (hidden, out_feats)

    # Forward: MLP -> graph attention -> mean over heads (identity for 1 head).
    h = mlp_forward(x, w1, b1, tile_v=tile_v)
    out = gat_attn_forward(h, adj_i8, wl, bl, wr, br, wll, bll, tile_v=tile_v)
    out = jax.block_until_ready(out)

    ref = mixgat_reference(x, adj_f32, w1, b1, wl, bl, wr, br, wll, bll)
    assert out.shape == (N, out_feats)
    # bf16 attention matmul + approx reciprocal => looser tolerance than pure f32.
    assert bool(jnp.allclose(out, ref, atol=2e-2, rtol=2e-2)), (
        "mismatch vs reference: max abs err = "
        f"{float(jnp.max(jnp.abs(out - ref)))}")
    print("KERNEL_OK")
</pallas_src>

<mosaic_0001>
module attributes {stable_mosaic.version = 11 : i64} {
  func.func @mlp_kernel(%arg0: i32, %arg1: memref<32x16xf32, #tpu.memory_space<vmem>>, %arg2: memref<16x64xf32, #tpu.memory_space<vmem>>, %arg3: memref<1x64xf32, #tpu.memory_space<vmem>>, %arg4: memref<32x64xf32, #tpu.memory_space<vmem>>) attributes {dimension_semantics = [#tpu.dimension_semantics<parallel>], iteration_bounds = array<i64: 4>, scalar_prefetch = 0 : i64, scratch_operands = 0 : i64, tpu.core_type = #tpu.core_type<tc>, window_params = [{transform_indices = @transform_0, window_bounds = array<i64: 32, 16>}, {pipeline_mode = #tpu.pipeline_mode<synchronous>, transform_indices = @transform_1, window_bounds = array<i64: 16, 64>}, {pipeline_mode = #tpu.pipeline_mode<synchronous>, transform_indices = @transform_2, window_bounds = array<i64: 1, 64>}, {transform_indices = @transform_3, window_bounds = array<i64: 32, 64>}]} {
    %c0 = arith.constant 0 : index
    %c0_0 = arith.constant 0 : index
    %0 = vector.load %arg1[%c0, %c0_0] : memref<32x16xf32, #tpu.memory_space<vmem>>, vector<32x16xf32>
    %c0_1 = arith.constant 0 : index
    %c0_2 = arith.constant 0 : index
    %1 = vector.load %arg2[%c0_1, %c0_2] : memref<16x64xf32, #tpu.memory_space<vmem>>, vector<16x64xf32>
    %cst = arith.constant dense<0.000000e+00> : vector<32x64xf32>
    %2 = tpu.matmul %0, %1, %cst {dimension_numbers = #tpu.dot_dimension_numbers<[1], [0], [0], [1], [0, 0, 1, 1], [], []>} : vector<32x16xf32>, vector<16x64xf32>, vector<32x64xf32> -> vector<32x64xf32>
    %c0_3 = arith.constant 0 : index
    %c0_4 = arith.constant 0 : index
    %3 = vector.load %arg3[%c0_3, %c0_4] : memref<1x64xf32, #tpu.memory_space<vmem>>, vector<1x64xf32>
    %4 = vector.broadcast %3 : vector<1x64xf32> to vector<32x64xf32>
    %5 = arith.addf %2, %4 : vector<32x64xf32>
    %cst_5 = arith.constant 0.000000e+00 : f32
    %6 = vector.broadcast %cst_5 : f32 to vector<32x64xf32>
    %7 = arith.maximumf %5, %6 : vector<32x64xf32>
    %c0_6 = arith.constant 0 : index
    %c0_7 = arith.constant 0 : index
    %8 = vector.load %arg4[%c0_6, %c0_7] : memref<32x64xf32, #tpu.memory_space<vmem>>, vector<32x64xf32>
    tpu.vector_store %arg4[%c0_6, %c0_7], %7 {strides = array<i32>} : memref<32x64xf32, #tpu.memory_space<vmem>>, vector<32x64xf32>,
    return
  }
  func.func @transform_0(%arg0: i32) -> (i32, i32) {
    %c0_i32 = arith.constant 0 : i32
    %c0_i32_0 = arith.constant 0 : i32
    return %arg0, %c0_i32 : i32, i32
  }
  func.func @transform_1(%arg0: i32) -> (i32, i32) {
    %c0_i32 = arith.constant 0 : i32
    %c0_i32_0 = arith.constant 0 : i32
    %c0_i32_1 = arith.constant 0 : i32
    return %c0_i32, %c0_i32_0 : i32, i32
  }
  func.func @transform_2(%arg0: i32) -> (i32, i32) {
    %c0_i32 = arith.constant 0 : i32
    %c0_i32_0 = arith.constant 0 : i32
    %c0_i32_1 = arith.constant 0 : i32
    return %c0_i32, %c0_i32_0 : i32, i32
  }
  func.func @transform_3(%arg0: i32) -> (i32, i32) {
    %c0_i32 = arith.constant 0 : i32
    %c0_i32_0 = arith.constant 0 : i32
    return %arg0, %c0_i32 : i32, i32
  }
}

</mosaic_0001>

<llo_original>
// kernel: tpu_custom_call.1
$region0: #{tpu_custom_call.1}
  #allocation0 [shape = 'u32[]', space=smem, size = 0x4, offset = 0x4, fixed_abs, tag = 'smem constant byte address 0x4 - core index']
  #allocation1 [shape = 'u32[144,128]{1,0:T(1,128)}', space=vmem, size = 0x12000, scoped, tag = 'internal scratch']
  %s0 = inlined_call_operand.vmem [shape: f32[128,16], index: 0, kind: input, shape index: {}]
  %s1 = inlined_call_operand.vmem [shape: f32[16,64], index: 1, kind: input, shape index: {}]
  %s2 = inlined_call_operand.vmem [shape: f32[1,64], index: 2, kind: input, shape index: {}]
  %s3 = inlined_call_operand.vmem [shape: f32[128,64], index: 3, kind: output, shape index: {}]
  %s4 = sld [smem:[#allocation0]]
  $region45: #{tpu_custom_call.1} parent=0
    _
  %s6 = ssub.s32 1, %s4
  %s7 = scalar_select 0, %s6, %s4
  loop: start=0, step=1, limit=6
  $region2: #{tpu_custom_call.1} parent=0 // loop_pre_header
    _
  $region3: #{tpu_custom_call.1} parent=0 // loop_header
    %s9 = sphi 0, %s13
    %p10 = scmp.ge.s32.totalorder %s9, 6
    %s19 = sphi 0, %s21
    %s22 = sphi 0, %s19
    %s23 = sphi 0, %s22
    %s39 = sphi 0, %s23
    %s43 = sphi 0, %s43
    %s45 = sphi 0, %s43
    %s46 = sphi 0, %s45
    %s60 = sphi 0, %s46
    %s64 = sphi 0, %s64
    %s66 = sphi 0, %s64
    %s67 = sphi 0, %s66
    %s81 = sphi 0, %s67
    %s87 = sphi 0, %s89
    %s90 = sphi 0, %s87
    %s91 = sphi 0, %s90
    %s107 = sphi 0, %s91
  $region4: #{tpu_custom_call.1} parent=0 // loop_header_branch
    %12 = sbr.rel (%p10) target = $region8
  $region5: #{tpu_custom_call.1} parent=0 // loop_body
    %s14 = ssub.s32 %s9, 1
    %s15 = ssub.s32 %s9, 2
    %s16 = sadd.s32 %s9, 1
    %s17 = ssub.s32 %s9, %s16
    %p18 = scmp.eq.s32.totalorder %s17, 0
    %s20 = sadd.s32 %s19, 1
    %s21 = scalar_select %p18, %s19, %s20
    %p24 = pneg %p18
    %p25 = scmp.eq.s32.totalorder %s9, 3
    %p26 = por %p24, %p25
    %p27 = scmp.ne.s32.totalorder %s19, %s22
    %p28 = scmp.eq.s32.totalorder %s9, 0
    %p29 = por %p27, %p28
    %p30 = scmp.ne.s32.totalorder %s19, %s22
    %p31 = scmp.eq.s32.totalorder %s14, 3
    %p32 = por %p30, %p31
    %p33 = scmp.ne.s32.totalorder %s22, %s23
    %p34 = scmp.eq.s32.totalorder %s14, 0
    %p35 = por %p33, %p34
    %p36 = scmp.ne.s32.totalorder %s22, %s23
    %p37 = scmp.eq.s32.totalorder %s15, 3
    %p38 = por %p36, %p37
    %p40 = scmp.ne.s32.totalorder %s23, %s39
    %p41 = scmp.eq.s32.totalorder %s15, 0
    %p42 = por %p40, %p41
    %s44 = sadd.s32 %s43, 1
    %p47 = scmp.eq.s32.totalorder %s9, 3
    %p48 = scmp.ne.s32.totalorder %s43, %s45
    %p49 = scmp.eq.s32.totalorder %s9, 0
    %p50 = por %p48, %p49
    %p51 = scmp.ne.s32.totalorder %s43, %s45
    %p52 = scmp.eq.s32.totalorder %s14, 3
    %p53 = por %p51, %p52
    %p54 = scmp.ne.s32.totalorder %s45, %s46
    %p55 = scmp.eq.s32.totalorder %s14, 0
    %p56 = por %p54, %p55
    %p57 = scmp.ne.s32.totalorder %s45, %s46
    %p58 = scmp.eq.s32.totalorder %s15, 3
    %p59 = por %p57, %p58
    %p61 = scmp.ne.s32.totalorder %s46, %s60
    %p62 = scmp.eq.s32.totalorder %s15, 0
    %p63 = por %p61, %p62
    %s65 = sadd.s32 %s64, 1
    %p68 = scmp.eq.s32.totalorder %s9, 3
    %p69 = scmp.ne.s32.totalorder %s64, %s66
    %p70 = scmp.eq.s32.totalorder %s9, 0
    %p71 = por %p69, %p70
    %p72 = scmp.ne.s32.totalorder %s64, %s66
    %p73 = scmp.eq.s32.totalorder %s14, 3
    %p74 = por %p72, %p73
    %p75 = scmp.ne.s32.totalorder %s66, %s67
    %p76 = scmp.eq.s32.totalorder %s14, 0
    %p77 = por %p75, %p76
    %p78 = scmp.ne.s32.totalorder %s66, %s67
    %p79 = scmp.eq.s32.totalorder %s15, 3
    %p80 = por %p78, %p79
    %p82 = scmp.ne.s32.totalorder %s67, %s81
    %p83 = scmp.eq.s32.totalorder %s15, 0
    %p84 = por %p82, %p83
    %s85 = ssub.s32 %s9, %s16
    %p86 = scmp.eq.s32.totalorder %s85, 0
    %s88 = sadd.s32 %s87, 1
    %s89 = scalar_select %p86, %s87, %s88
    %p92 = pneg %p86
    %p93 = scmp.eq.s32.totalorder %s9, 3
    %p94 = por %p92, %p93
    %p95 = scmp.ne.s32.totalorder %s87, %s90
    %p96 = scmp.eq.s32.totalorder %s9, 0
    %p97 = por %p95, %p96
    %p98 = scmp.ne.s32.totalorder %s87, %s90
    %p99 = scmp.eq.s32.totalorder %s14, 3
    %p100 = por %p98, %p99
    %p101 = scmp.ne.s32.totalorder %s90, %s91
    %p102 = scmp.eq.s32.totalorder %s14, 0
    %p103 = por %p101, %p102
    %p104 = scmp.ne.s32.totalorder %s90, %s91
    %p105 = scmp.eq.s32.totalorder %s15, 3
    %p106 = por %p104, %p105
    %p108 = scmp.ne.s32.totalorder %s91, %s107
    %p109 = scmp.eq.s32.totalorder %s15, 0
    %p110 = por %p108, %p109
    %p111 = scmp.le.s32.totalorder 1, %s9
    %p112 = scmp.lt.s32.totalorder %s9, 5
    %p113 = pnand %p111, %p112
    %p114 = pneg %p113
    // Predicated region
    $region9: #{tpu_custom_call.1} parent=5 // pred_check
      _
    $region10: #{tpu_custom_call.1} parent=5 // pred_check_branch
      %116 = sbr.rel (%p113) target = $region12
    $region11: #{tpu_custom_call.1} parent=5 // pred_region
      %s117 = ssub.s32 %s9, 1
      // Predicated region
      $region13: #{tpu_custom_call.1} parent=11 // pred_check
        %p118 = pneg %p56
      $region14: #{tpu_custom_call.1} parent=11 // pred_check_branch
        %120 = sbr.rel (%p118) target = $region16
      $region15: #{tpu_custom_call.1} parent=11 // pred_region
        _
      $region16: #{tpu_custom_call.1} parent=11 // pred_fallthru
        _
      // Predicated region
      $region17: #{tpu_custom_call.1} parent=11 // pred_check
        %p121 = pneg %p77
      $region18: #{tpu_custom_call.1} parent=11 // pred_check_branch
        %123 = sbr.rel (%p121) target = $region20
      $region19: #{tpu_custom_call.1} parent=11 // pred_region
        _
      $region20: #{tpu_custom_call.1} parent=11 // pred_fallthru
        _
    $region12: #{tpu_custom_call.1} parent=5 // pred_fallthru
      _
    %p124 = scmp.lt.s32.totalorder %s9, 4
    // Predicated region
    $region21: #{tpu_custom_call.1} parent=5 // pred_check
      %p125 = pneg %p124
    $region22: #{tpu_custom_call.1} parent=5 // pred_check_branch
      %127 = sbr.rel (%p125) target = $region24
    $region23: #{tpu_custom_call.1} parent=5 // pred_region
      // Predicated region
      $region25: #{tpu_custom_call.1} parent=23 // pred_check
        %p128 = pneg %p29
      $region26: #{tpu_custom_call.1} parent=23 // pred_check_branch
        %130 = sbr.rel (%p128) target = $region28
      $region27: #{tpu_custom_call.1} parent=23 // pred_region
        %s131 = smul.u32 4, %s9
        %p132 = scmp.lt.s32.totalorder %s131, 15
        %s133 = scalar_select %p132, %s131, 15
        %s134 = smul.addr %s133, 8
        %s135 = scalar_lea.vmem %s0, %s134
        %s136 = smul.u32 4, %s9
      $region28: #{tpu_custom_call.1} parent=23 // pred_fallthru
        _
    $region24: #{tpu_custom_call.1} parent=5 // pred_fallthru
      _
    %p137 = scmp.le.s32.totalorder 1, %s9
    %p138 = scmp.lt.s32.totalorder %s9, 5
    %p139 = pnand %p137, %p138
    %p140 = pneg %p139
    // Predicated region
    $region29: #{tpu_custom_call.1} parent=5 // pred_check
      _
    $region30: #{tpu_custom_call.1} parent=5 // pred_check_branch
      %142 = sbr.rel (%p139) target = $region32
    $region31: #{tpu_custom_call.1} parent=5 // pred_region
      %s143 = ssub.s32 %s9, 1
      %s144 = smul.u32 4, %s14
      %p145 = scmp.lt.s32.totalorder %s144, 15
      %s146 = scalar_select %p145, %s144, 15
      %s147 = smul.addr %s146, 8
      %s148 = scalar_lea.vmem %s0, %s147
      %p149 = pneg %p35
      %p150 = pneg %p32
      %p151 = pneg %p56
      %p152 = pneg %p53
      %p153 = pneg %p77
      %p154 = pneg %p74
      %p155 = pneg %p103
      %p156 = pneg %p100
      %s157 = smul.u32 4, %s14
      %p158 = scmp.lt.s32.totalorder %s157, 15
      %s159 = scalar_select %p158, %s157, 15
      %s160 = smul.addr %s159, 8
      %s161 = scalar_lea.vmem %s3, %s160
      %s162 = smul.u32 4, %s14
      %p163 = scmp.lt.s32.totalorder %s162, 15
      %s164 = scalar_select %p163, %s162, 15
      %s165 = smul.addr %s164, 8
      %s166 = scalar_lea.vmem %s0, %s165
      %s167 = smul.u32 4, %s14
      %s168 = smul.u32 4, %s14
      %p169 = scmp.lt.s32.totalorder %s168, 15
      %s170 = scalar_select %p169, %s168, 15
      %s171 = smul.addr %s170, 8
      %s172 = scalar_lea.vmem %s3, %s171
      %s173 = smul.u32 4, %s14
      %v174 = vld [vmem:[%s166] sm:$0xff]
      %v175 = vld [vmem:[%s166 + $0x8] sm:$0xff]
      %v176 = vld [vmem:[%s166 + $0x10] sm:$0xff]
      %v177 = vld [vmem:[%s166 + $0x18] sm:$0xff]
      %v178 = vld [vmem:[%s1] sm:$0xff]
      %v179 = vld [vmem:[%s1 + $0x8] sm:$0xff]
      %v180 = vld [vmem:[%s2] sm:$0x1]
      %v182 = vlaneseq
      %v183 = vshrl.u32 %v182, 7
      %v184 = vsub.s32 0, %v183
      %v185 = vrot.slane %v180, %v184
      %vm187 = vcmask 130048
      %v189 = vsel %vm187, %v174, 0
      %v192 = vsel %vm187, %v175, 0
      %v195 = vsel %vm187, %v176, 0
      %v198 = vsel %vm187, %v177, 0
      %200 = vmatprep.subr.mxu0 0.0
      %201 = vmatpush1.msra.mxu0 0.0
      %202 = vmatprep.subr.mxu0 0.0
      %203 = vmatpush1.msra.mxu0 0.0
      %204 = vmatprep.subr.mxu0 0.0
      %205 = vmatpush1.msra.mxu0 0.0
      %206 = vmatprep.subr.mxu0 0.0
      %207 = vmatpush1.msra.mxu0 0.0
      %208 = vmatprep.subr.mxu0 0.0
      %209 = vmatpush1.msra.mxu0 0.0
      %210 = vmatprep.subr.mxu0 0.0
      %211 = vmatpush1.msra.mxu0 0.0
      %212 = vmatprep.subr.mxu0 0.0
      %213 = vmatpush1.msra.mxu0 0.0
      %214 = vmatprep.subr.mxu0 0.0
      %215 = vmatpush1.msra.mxu0 0.0
      %216 = vmatprep.subr.mxu0 0.0
      %217 = vmatpush1.msra.mxu0 0.0
      %218 = vmatprep.subr.mxu0 0.0
      %219 = vmatpush1.msra.mxu0 0.0
      %220 = vmatprep.subr.mxu0 0.0
      %221 = vmatpush1.msra.mxu0 0.0
      %222 = vmatprep.subr.mxu0 0.0
      %223 = vmatpush1.msra.mxu0 0.0
      %224 = vmatprep.subr.mxu0 0.0
      %225 = vmatpush1.msra.mxu0 0.0
      %226 = vmatprep.subr.mxu0 0.0
      %227 = vmatpush1.msra.mxu0 0.0
      %228 = vmatprep.subr.mxu0 0.0
      %229 = vmatpush1.msra.mxu0 %v179
      %230 = vmatprep.subr.mxu0 0.0
      %231 = vmatpush1.msra.mxu0 %v178
      %232 = vmatprep.subr.mxu0 0.0
      %233 = vmatpush2.msra.mxu0 0.0
      %234 = vmatprep.subr.mxu0 0.0
      %235 = vmatpush2.msra.mxu0 0.0
      %236 = vmatprep.subr.mxu0 0.0
      %237 = vmatpush2.msra.mxu0 0.0
      %238 = vmatprep.subr.mxu0 0.0
      %239 = vmatpush2.msra.mxu0 0.0
      %240 = vmatprep.subr.mxu0 0.0
      %241 = vmatpush2.msra.mxu0 0.0
      %242 = vmatprep.subr.mxu0 0.0
      %243 = vmatpush2.msra.mxu0 0.0
      %244 = vmatprep.subr.mxu0 0.0
      %245 = vmatpush2.msra.mxu0 0.0
      %246 = vmatprep.subr.mxu0 0.0
      %247 = vmatpush2.msra.mxu0 0.0
      %248 = vmatprep.subr.mxu0 0.0
      %249 = vmatpush2.msra.mxu0 0.0
      %250 = vmatprep.subr.mxu0 0.0
      %251 = vmatpush2.msra.mxu0 0.0
      %252 = vmatprep.subr.mxu0 0.0
      %253 = vmatpush2.msra.mxu0 0.0
      %254 = vmatprep.subr.mxu0 0.0
      %255 = vmatpush2.msra.mxu0 0.0
      %256 = vmatprep.subr.mxu0 0.0
      %257 = vmatpush2.msra.mxu0 0.0
      %258 = vmatprep.subr.mxu0 0.0
      %259 = vmatpush2.msra.mxu0 0.0
      %260 = vmatprep.subr.mxu0 0.0
      %261 = vmatpush2.msra.mxu0 0.0
      %262 = vmatprep.subr.mxu0 0.0
      %263 = vmatpush2.msra.mxu0 0.0
      %264 = vmatprep.mubr.f32.mxu0 0.0
      %265 = vmatmul.mubr.f32.gmra.mxu0 %v189
      %v266 = vpop.f32.mrf.mxu0
      %v267 = vadd.f32 %v185, %v266
      %v268 = vpop.f32.mrf.mxu0
      %269 = vmatprep.mubr.f32.mxu0 0.0
      %270 = vmatmul.mubr.f32.gmra.mxu0 %v192
      %v271 = vpop.f32.mrf.mxu0
      %v272 = vadd.f32 %v185, %v271
      %v273 = vpop.f32.mrf.mxu0
      %274 = vmatprep.mubr.f32.mxu0 0.0
      %275 = vmatmul.mubr.f32.gmra.mxu0 %v195
      %v276 = vpop.f32.mrf.mxu0
      %v277 = vadd.f32 %v185, %v276
      %v278 = vpop.f32.mrf.mxu0
      %279 = vmatprep.mubr.f32.mxu0 0.0
      %280 = vmatmul.mubr.f32.gmra.mxu0 %v198
      %v281 = vpop.f32.mrf.mxu0
      %v282 = vadd.f32 %v185, %v281
      %v283 = vpop.f32.mrf.mxu0
      %284 = vdwg.mxu0
      %v285 = vmax.f32 %v267, 0.0
      %v286 = vmax.f32 %v272, 0.0
      %v287 = vmax.f32 %v277, 0.0
      %v288 = vmax.f32 %v282, 0.0
      %vm289 = vcmask 523264
      %290 = vst.msk [vmem:[%s172] sm:$0xff] %vm289, %v285
      %291 = vst.msk [vmem:[%s172 + $0x8] sm:$0xff] %vm289, %v286
      %292 = vst.msk [vmem:[%s172 + $0x10] sm:$0xff] %vm289, %v287
      %293 = vst.msk [vmem:[%s172 + $0x18] sm:$0xff] %vm289, %v288
      %s294 = smul.u32 4, %s14
      %p295 = scmp.lt.s32.totalorder %s294, 15
      %s296 = scalar_select %p295, %s294, 15
      %s297 = smul.addr %s296, 8
      %s298 = scalar_lea.vmem %s3, %s297
      // Predicated region
      $region33: #{tpu_custom_call.1} parent=31 // pred_check
        %p299 = pneg %p100
      $region34: #{tpu_custom_call.1} parent=31 // pred_check_branch
        %301 = sbr.rel (%p299) target = $region36
      $region35: #{tpu_custom_call.1} parent=31 // pred_region
        %s302 = smul.u32 4, %s14
      $region36: #{tpu_custom_call.1} parent=31 // pred_fallthru
        _
    $region32: #{tpu_custom_call.1} parent=5 // pred_fallthru
      _
    %p303 = scmp.le.s32.totalorder 2, %s9
    // Predicated region
    $region37: #{tpu_custom_call.1} parent=5 // pred_check
      %p304 = pneg %p303
    $region38: #{tpu_custom_call.1} parent=5 // pred_check_branch
      %306 = sbr.rel (%p304) target = $region40
    $region39: #{tpu_custom_call.1} parent=5 // pred_region
      %s307 = ssub.s32 %s9, 2
      // Predicated region
      $region41: #{tpu_custom_call.1} parent=39 // pred_check
        %p308 = pneg %p106
      $region42: #{tpu_custom_call.1} parent=39 // pred_check_branch
        %310 = sbr.rel (%p308) target = $region44
      $region43: #{tpu_custom_call.1} parent=39 // pred_region
        %s311 = smul.u32 4, %s15
        %p312 = scmp.lt.s32.totalorder %s311, 15
        %s313 = scalar_select %p312, %s311, 15
        %s314 = smul.addr %s313, 8
        %s315 = scalar_lea.vmem %s3, %s314
      $region44: #{tpu_custom_call.1} parent=39 // pred_fallthru
        _
    $region40: #{tpu_custom_call.1} parent=5 // pred_fallthru
      _
  $region6: #{tpu_custom_call.1} parent=0 // loop_footer
    %s13 = sadd.s32 1, %s9
  $region7: #{tpu_custom_call.1} parent=0 // loop_footer_branch
    %8 = sbr.rel target = $region3
  $region8: #{tpu_custom_call.1} parent=0 // loop_exit
    _

</llo_original>
